<compile_context>
chip_gen: v7x
topology: tpu7x:2x2x1
jax: 0.10.0
libtpu: 0.0.40
codegen_flags: <defaults>
</compile_context>

<pallas_src>
import functools

import jax
import jax.numpy as jnp
from jax.experimental import pallas as pl
from jax.experimental.pallas import tpu as pltpu


def _resblock_kernel(*refs, K, d, L, Lt, NT, Cout, l1, l3, use_conv3):
    """Grid = (batch, L-tile). Each conv tap is one small accumulated matmul."""
    if use_conv3:
        (x_ref, w1_ref, b1_ref, w2_ref, b2_ref, w3_ref, b3_ref,
         o_ref, x_scr) = refs
    else:
        (x_ref, w1_ref, b1_ref, w2_ref, b2_ref,
         o_ref, x_scr) = refs

    pad_l = d + l1          # left zero halo: conv1 'same' pad + conv2 r1 halo

    # ---- per-batch in-kernel halo: zero-padded bf16 copy of x in VMEM ------
    def build_padded():
        x_scr[...] = jnp.zeros_like(x_scr)
        x_scr[:, pad_l:pad_l + L] = x_ref[0].astype(x_scr.dtype)

    if NT == 1:
        build_padded()
        t0 = 0                                     # static offsets below
    else:
        lt = pl.program_id(1)
        pl.when(lt == 0)(build_padded)             # new batch element only
        t0 = lt * Lt
        if Lt % 128 == 0:
            t0 = pl.multiple_of(t0, 128)

    Lext = Lt + 2 * d        # conv1 computed on a d-extended window for conv2

    # ---- conv1 (dilated, 'same') + ReLU: K accumulated MXU matmuls ---------
    acc1 = jnp.zeros((Cout, Lext), jnp.float32)
    for k in range(K):
        xs = x_scr[:, pl.ds(t0 + k * d, Lext)]                    # (Cin, Lext) bf16
        acc1 = acc1 + jnp.dot(w1_ref[k], xs,
                              preferred_element_type=jnp.float32)
    r1 = jnp.maximum(acc1 + b1_ref[...], 0.0)                     # (Cout, Lext) f32
    # conv2's 'same' padding requires r1 outside [0, L) to be exactly zero
    # (the extended columns would otherwise hold relu(b1)).
    pos = t0 - d + jax.lax.broadcasted_iota(jnp.int32, (1, Lext), 1)
    r1 = jnp.where((pos >= 0) & (pos < L), r1, 0.0)

    # ---- conv2 (Cout -> 1, kernel 3, dilated): VPU taps + one XLU reduce ----
    acc2 = jnp.zeros((Cout, Lt), jnp.float32)
    for k in range(3):
        acc2 = acc2 + r1[:, k * d:k * d + Lt] * w2_ref[:, k:k + 1]
    r2 = jnp.sum(acc2, axis=0, keepdims=True) + b2_ref[0]         # (1, Lt)

    # ---- shortcut ------------------------------------------------------------
    if use_conv3:
        # conv3 ('same', dilation=1) reads the same padded scratch; the zero
        # halos line up because l1 >= l3 and total1-l1 >= K-1-l3 (asserted).
        off3 = d + (l1 - l3)
        acc3 = jnp.zeros((Cout, Lt), jnp.float32)
        for k in range(K):
            xs = x_scr[:, pl.ds(t0 + off3 + k, Lt)]
            acc3 = acc3 + jnp.dot(w3_ref[k], xs,
                                  preferred_element_type=jnp.float32)
        sc = acc3 + b3_ref[...]
    else:
        # Cin == Cout: identity shortcut straight from the raw f32 input block.
        sc = x_ref[0, :, pl.ds(t0, Lt)]

    # (1, Lt) broadcast-added to (Cout, Lt), then ReLU.
    o_ref[0] = jnp.maximum(r2 + sc, 0.0).astype(o_ref.dtype)


def _pick_l_tile(L, target=512):
    """Largest lane-dense tile (multiple of 128, <= target) that divides L."""
    if L <= target or L % 128 != 0:
        return L
    for lt in range(target, 127, -128):
        if L % lt == 0:
            return lt
    return L


def resblock_forward(x, params, *, kernel_size, dilation):
    """x: (B, Cin, L) float32.  params = (w1, b1, w2, b2, w3, b3) in PyTorch layouts."""
    B, Cin, L = x.shape
    w1, b1, w2, b2, w3, b3 = params
    Cout = w1.shape[0]
    use_conv3 = (Cin != Cout)
    K, d = kernel_size, dilation
    assert K >= 1 and d >= 1

    # PyTorch 'same' padding: total = dilation*(K-1), left = total // 2.
    total1 = d * (K - 1)
    l1 = total1 // 2
    l3 = (K - 1) // 2
    # Shared-halo validity for reading conv3 taps from the conv1-padded scratch.
    assert l1 >= l3 and (total1 - l1) >= (K - 1 - l3)

    Lt = _pick_l_tile(L)
    NT = L // Lt                           # Lt divides L by construction
    W = L + total1 + 2 * d                 # scratch width: conv1 pad + conv2 halo

    # Tap-major bf16 weight stacks: w[k] is the (Cout, Cin) matrix of tap k.
    w1t = jnp.transpose(w1, (2, 0, 1)).astype(jnp.bfloat16)       # (K, Cout, Cin)
    b1c = b1.reshape(Cout, 1).astype(jnp.float32)
    w2m = w2[0].astype(jnp.float32)                               # (Cout, 3) VPU operand
    b2s = b2.reshape(1).astype(jnp.float32)                       # scalar -> SMEM

    in_specs = [
        pl.BlockSpec((1, Cin, L), lambda b, t: (b, 0, 0)),        # raw x (no HBM pad)
        pl.BlockSpec((K, Cout, Cin), lambda b, t: (0, 0, 0)),     # w1 taps (bf16)
        pl.BlockSpec((Cout, 1), lambda b, t: (0, 0)),             # b1
        pl.BlockSpec((Cout, 3), lambda b, t: (0, 0)),             # w2 (VPU)
        pl.BlockSpec(memory_space=pltpu.MemorySpace.SMEM),        # b2 scalar
    ]
    args = [x, w1t, b1c, w2m, b2s]
    if use_conv3:
        w3t = jnp.transpose(w3, (2, 0, 1)).astype(jnp.bfloat16)   # (K, Cout, Cin)
        b3c = b3.reshape(Cout, 1).astype(jnp.float32)
        in_specs += [
            pl.BlockSpec((K, Cout, Cin), lambda b, t: (0, 0, 0)),
            pl.BlockSpec((Cout, 1), lambda b, t: (0, 0)),
        ]
        args += [w3t, b3c]

    kernel = functools.partial(
        _resblock_kernel, K=K, d=d, L=L, Lt=Lt, NT=NT, Cout=Cout,
        l1=l1, l3=l3, use_conv3=use_conv3)

    grid_spec = pltpu.PrefetchScalarGridSpec(
        num_scalar_prefetch=0,
        grid=(B, NT),
        in_specs=in_specs,
        out_specs=pl.BlockSpec((1, Cout, Lt), lambda b, t: (b, 0, t)),
        scratch_shapes=[pltpu.VMEM((Cin, W), jnp.bfloat16)],      # padded x copy
    )

    # VMEM budget: double-buffered x + out blocks, one padded scratch, weights.
    est = (2 * Cin * L * 4            # x blocks, f32, double-buffered
           + Cin * W * 2              # padded bf16 scratch (single instance)
           + 2 * Cout * Lt * 4        # out blocks, f32, double-buffered
           + 4 * K * Cout * Cin * 2   # weight stacks (bf16, both buffers)
           + 8 * Cout * 4)            # biases / w2
    vmem_limit = min(max(2 * est, 16 * 1024 * 1024), 48 * 1024 * 1024)

    return pl.pallas_call(
        kernel,
        out_shape=jax.ShapeDtypeStruct((B, Cout, L), jnp.float32),
        grid_spec=grid_spec,
        compiler_params=pltpu.CompilerParams(
            dimension_semantics=("parallel", "arbitrary"),  # B across TCs; L carries scratch
            vmem_limit_bytes=vmem_limit,
        ),
    )(*args)


# ---------------- plain-JAX reference (for correctness check only) ----------------
def _conv1d_same_ref(x, w, b, dilation):
    K = w.shape[-1]
    total = dilation * (K - 1)
    left = total // 2
    out = jax.lax.conv_general_dilated(
        x, w, window_strides=(1,), padding=[(left, total - left)],
        rhs_dilation=(dilation,), dimension_numbers=('NCH', 'OIH', 'NCH'),
        precision=jax.lax.Precision.HIGHEST)
    return out + b[None, :, None]


def _resblock_ref(x, params, *, kernel_size, dilation):
    w1, b1, w2, b2, w3, b3 = params
    Cout = w1.shape[0]
    r = jax.nn.relu(_conv1d_same_ref(x, w1, b1, dilation))
    r = _conv1d_same_ref(r, w2, b2, dilation)
    shortcut = x if x.shape[1] == Cout else _conv1d_same_ref(x, w3, b3, 1)
    return jax.nn.relu(r + shortcut)


def _make_params(key, Cin, Cout, K):
    ks = jax.random.split(key, 6)
    w1 = jax.random.uniform(ks[0], (Cout, Cin, K), jnp.float32, -0.3, 0.3)
    b1 = jax.random.uniform(ks[1], (Cout,), jnp.float32, -0.3, 0.3)
    w2 = jax.random.uniform(ks[2], (1, Cout, 3), jnp.float32, -0.3, 0.3)
    b2 = jax.random.uniform(ks[3], (1,), jnp.float32, -0.3, 0.3)
    w3 = jax.random.uniform(ks[4], (Cout, Cin, K), jnp.float32, -0.3, 0.3)
    b3 = jax.random.uniform(ks[5], (Cout,), jnp.float32, -0.3, 0.3)
    return (w1, b1, w2, b2, w3, b3)


if __name__ == "__main__":
    key = jax.random.PRNGKey(0)
    k_a, k_b, k_xa, k_xb = jax.random.split(key, 4)

    # Case 1: Cin != Cout  (conv3 shortcut), dilation 2.
    B, Cin, Cout, L, K, d = 2, 4, 8, 16, 3, 2
    x = jax.random.normal(k_xa, (B, Cin, L), jnp.float32)
    params = _make_params(k_a, Cin, Cout, K)
    out = jax.block_until_ready(resblock_forward(x, params, kernel_size=K, dilation=d))
    ref = _resblock_ref(x, params, kernel_size=K, dilation=d)
    assert out.shape == ref.shape, (out.shape, ref.shape)
    # bf16 MXU operands (f32 accumulation) vs HIGHEST-precision f32 reference.
    assert jnp.allclose(out, ref, atol=5e-2, rtol=5e-2), float(jnp.max(jnp.abs(out - ref)))

    # Case 2: Cin == Cout  (identity shortcut, no conv3 operands DMA'd), dilation 1.
    B2, C2, L2, K2, d2 = 2, 8, 16, 3, 1
    x2 = jax.random.normal(k_xb, (B2, C2, L2), jnp.float32)
    params2 = _make_params(k_b, C2, C2, K2)
    out2 = jax.block_until_ready(resblock_forward(x2, params2, kernel_size=K2, dilation=d2))
    ref2 = _resblock_ref(x2, params2, kernel_size=K2, dilation=d2)
    assert out2.shape == ref2.shape, (out2.shape, ref2.shape)
    assert jnp.allclose(out2, ref2, atol=5e-2, rtol=5e-2), float(jnp.max(jnp.abs(out2 - ref2)))

    print("KERNEL_OK")
</pallas_src>

<mosaic_0001>
module attributes {stable_mosaic.version = 11 : i64} {
  func.func @_resblock_kernel(%arg0: i32, %arg1: i32, %arg2: memref<1x4x16xf32, #tpu.memory_space<vmem>>, %arg3: memref<3x8x4xbf16, #tpu.memory_space<vmem>>, %arg4: memref<8x1xf32, #tpu.memory_space<vmem>>, %arg5: memref<8x3xf32, #tpu.memory_space<vmem>>, %arg6: memref<1xf32, #tpu.memory_space<smem>>, %arg7: memref<3x8x4xbf16, #tpu.memory_space<vmem>>, %arg8: memref<8x1xf32, #tpu.memory_space<vmem>>, %arg9: memref<1x8x16xf32, #tpu.memory_space<vmem>>, %arg10: memref<4x24xbf16, #tpu.memory_space<vmem>>) attributes {dimension_semantics = [#tpu.dimension_semantics<parallel>, #tpu.dimension_semantics<arbitrary>], iteration_bounds = array<i64: 2, 1>, scalar_prefetch = 0 : i64, scratch_operands = 1 : i64, tpu.core_type = #tpu.core_type<tc>, window_params = [{transform_indices = @transform_0, window_bounds = array<i64: 1, 4, 16>}, {pipeline_mode = #tpu.pipeline_mode<synchronous>, transform_indices = @transform_1, window_bounds = array<i64: 3, 8, 4>}, {pipeline_mode = #tpu.pipeline_mode<synchronous>, transform_indices = @transform_2, window_bounds = array<i64: 8, 1>}, {pipeline_mode = #tpu.pipeline_mode<synchronous>, transform_indices = @transform_3, window_bounds = array<i64: 8, 3>}, {transform_indices = @transform_4, window_bounds = array<i64: 1>}, {pipeline_mode = #tpu.pipeline_mode<synchronous>, transform_indices = @transform_5, window_bounds = array<i64: 3, 8, 4>}, {pipeline_mode = #tpu.pipeline_mode<synchronous>, transform_indices = @transform_6, window_bounds = array<i64: 8, 1>}, {transform_indices = @transform_7, window_bounds = array<i64: 1, 8, 16>}]} {
    %cst = arith.constant 0.000000e+00 : bf16
    %0 = vector.broadcast %cst : bf16 to vector<4x24xbf16>
    %c0 = arith.constant 0 : index
    %c0_0 = arith.constant 0 : index
    %1 = vector.load %arg10[%c0, %c0_0] : memref<4x24xbf16, #tpu.memory_space<vmem>>, vector<4x24xbf16>
    tpu.vector_store %arg10[%c0, %c0_0], %0 {strides = array<i32>} : memref<4x24xbf16, #tpu.memory_space<vmem>>, vector<4x24xbf16>,
    %c0_1 = arith.constant 0 : index
    %c0_2 = arith.constant 0 : index
    %c0_3 = arith.constant 0 : index
    %2 = vector.load %arg2[%c0_1, %c0_2, %c0_3] : memref<1x4x16xf32, #tpu.memory_space<vmem>>, vector<1x4x16xf32>
    %3 = vector.shape_cast %2 : vector<1x4x16xf32> to vector<4x16xf32>
    %4 = arith.truncf %3 : vector<4x16xf32> to vector<4x16xbf16>
    %c0_4 = arith.constant 0 : index
    %c4 = arith.constant 4 : index
    %5 = vector.load %arg10[%c0_4, %c4] : memref<4x24xbf16, #tpu.memory_space<vmem>>, vector<4x16xbf16>
    tpu.vector_store %arg10[%c0_4, %c4], %4 {strides = array<i32>} : memref<4x24xbf16, #tpu.memory_space<vmem>>, vector<4x16xbf16>,
    %cst_5 = arith.constant 0.000000e+00 : f32
    %6 = vector.broadcast %cst_5 : f32 to vector<8x20xf32>
    %c0_6 = arith.constant 0 : index
    %c0_7 = arith.constant 0 : index
    %7 = vector.load %arg10[%c0_6, %c0_7] : memref<4x24xbf16, #tpu.memory_space<vmem>>, vector<4x20xbf16>
    %c0_8 = arith.constant 0 : index
    %c0_9 = arith.constant 0 : index
    %c0_10 = arith.constant 0 : index
    %8 = vector.load %arg3[%c0_8, %c0_9, %c0_10] : memref<3x8x4xbf16, #tpu.memory_space<vmem>>, vector<1x8x4xbf16>
    %9 = vector.shape_cast %8 : vector<1x8x4xbf16> to vector<8x4xbf16>
    %cst_11 = arith.constant dense<0.000000e+00> : vector<8x20xf32>
    %10 = tpu.matmul %9, %7, %cst_11 {dimension_numbers = #tpu.dot_dimension_numbers<[1], [0], [0], [1], [0, 0, 1, 1], [], []>} : vector<8x4xbf16>, vector<4x20xbf16>, vector<8x20xf32> -> vector<8x20xf32>
    %11 = arith.addf %6, %10 : vector<8x20xf32>
    %c0_12 = arith.constant 0 : index
    %c2 = arith.constant 2 : index
    %12 = vector.load %arg10[%c0_12, %c2] : memref<4x24xbf16, #tpu.memory_space<vmem>>, vector<4x20xbf16>
    %c1 = arith.constant 1 : index
    %c0_13 = arith.constant 0 : index
    %c0_14 = arith.constant 0 : index
    %13 = vector.load %arg3[%c1, %c0_13, %c0_14] : memref<3x8x4xbf16, #tpu.memory_space<vmem>>, vector<1x8x4xbf16>
    %14 = vector.shape_cast %13 : vector<1x8x4xbf16> to vector<8x4xbf16>
    %cst_15 = arith.constant dense<0.000000e+00> : vector<8x20xf32>
    %15 = tpu.matmul %14, %12, %cst_15 {dimension_numbers = #tpu.dot_dimension_numbers<[1], [0], [0], [1], [0, 0, 1, 1], [], []>} : vector<8x4xbf16>, vector<4x20xbf16>, vector<8x20xf32> -> vector<8x20xf32>
    %16 = arith.addf %11, %15 : vector<8x20xf32>
    %c0_16 = arith.constant 0 : index
    %c4_17 = arith.constant 4 : index
    %17 = vector.load %arg10[%c0_16, %c4_17] : memref<4x24xbf16, #tpu.memory_space<vmem>>, vector<4x20xbf16>
    %c2_18 = arith.constant 2 : index
    %c0_19 = arith.constant 0 : index
    %c0_20 = arith.constant 0 : index
    %18 = vector.load %arg3[%c2_18, %c0_19, %c0_20] : memref<3x8x4xbf16, #tpu.memory_space<vmem>>, vector<1x8x4xbf16>
    %19 = vector.shape_cast %18 : vector<1x8x4xbf16> to vector<8x4xbf16>
    %cst_21 = arith.constant dense<0.000000e+00> : vector<8x20xf32>
    %20 = tpu.matmul %19, %17, %cst_21 {dimension_numbers = #tpu.dot_dimension_numbers<[1], [0], [0], [1], [0, 0, 1, 1], [], []>} : vector<8x4xbf16>, vector<4x20xbf16>, vector<8x20xf32> -> vector<8x20xf32>
    %21 = arith.addf %16, %20 : vector<8x20xf32>
    %c0_22 = arith.constant 0 : index
    %c0_23 = arith.constant 0 : index
    %22 = vector.load %arg4[%c0_22, %c0_23] : memref<8x1xf32, #tpu.memory_space<vmem>>, vector<8x1xf32>
    %23 = vector.broadcast %22 : vector<8x1xf32> to vector<8x20xf32>
    %24 = arith.addf %21, %23 : vector<8x20xf32>
    %cst_24 = arith.constant 0.000000e+00 : f32
    %25 = vector.broadcast %cst_24 : f32 to vector<8x20xf32>
    %26 = arith.maximumf %24, %25 : vector<8x20xf32>
    %27 = tpu.iota {dimensions = array<i32: 1>} : vector<1x20xi32>
    %c-2_i32 = arith.constant -2 : i32
    %28 = vector.broadcast %c-2_i32 : i32 to vector<1x20xi32>
    %29 = arith.addi %28, %27 : vector<1x20xi32>
    %c0_i32 = arith.constant 0 : i32
    %30 = vector.broadcast %c0_i32 : i32 to vector<1x20xi32>
    %31 = arith.cmpi sge, %29, %30 : vector<1x20xi32>
    %c16_i32 = arith.constant 16 : i32
    %32 = vector.broadcast %c16_i32 : i32 to vector<1x20xi32>
    %33 = arith.cmpi slt, %29, %32 : vector<1x20xi32>
    %34 = arith.andi %31, %33 : vector<1x20xi1>
    %cst_25 = arith.constant 0.000000e+00 : f32
    %35 = vector.shape_cast %34 : vector<1x20xi1> to vector<1x20xi1>
    %36 = vector.broadcast %35 : vector<1x20xi1> to vector<8x20xi1>
    %37 = vector.broadcast %cst_25 : f32 to vector<8x20xf32>
    %38 = arith.select %36, %26, %37 : vector<8x20xi1>, vector<8x20xf32>
    %cst_26 = arith.constant 0.000000e+00 : f32
    %39 = vector.broadcast %cst_26 : f32 to vector<8x16xf32>
    %40 = vector.extract_strided_slice %38 {offsets = [0, 0], sizes = [8, 16], strides = [1, 1]} : vector<8x20xf32> to vector<8x16xf32>
    %c0_27 = arith.constant 0 : index
    %c0_28 = arith.constant 0 : index
    %41 = vector.load %arg5[%c0_27, %c0_28] : memref<8x3xf32, #tpu.memory_space<vmem>>, vector<8x1xf32>
    %42 = vector.broadcast %41 : vector<8x1xf32> to vector<8x16xf32>
    %43 = arith.mulf %40, %42 : vector<8x16xf32>
    %44 = arith.addf %39, %43 : vector<8x16xf32>
    %45 = vector.extract_strided_slice %38 {offsets = [0, 2], sizes = [8, 16], strides = [1, 1]} : vector<8x20xf32> to vector<8x16xf32>
    %c0_29 = arith.constant 0 : index
    %c1_30 = arith.constant 1 : index
    %46 = vector.load %arg5[%c0_29, %c1_30] : memref<8x3xf32, #tpu.memory_space<vmem>>, vector<8x1xf32>
    %47 = vector.broadcast %46 : vector<8x1xf32> to vector<8x16xf32>
    %48 = arith.mulf %45, %47 : vector<8x16xf32>
    %49 = arith.addf %44, %48 : vector<8x16xf32>
    %50 = vector.extract_strided_slice %38 {offsets = [0, 4], sizes = [8, 16], strides = [1, 1]} : vector<8x20xf32> to vector<8x16xf32>
    %c0_31 = arith.constant 0 : index
    %c2_32 = arith.constant 2 : index
    %51 = vector.load %arg5[%c0_31, %c2_32] : memref<8x3xf32, #tpu.memory_space<vmem>>, vector<8x1xf32>
    %52 = vector.broadcast %51 : vector<8x1xf32> to vector<8x16xf32>
    %53 = arith.mulf %50, %52 : vector<8x16xf32>
    %54 = arith.addf %49, %53 : vector<8x16xf32>
    %cst_33 = arith.constant dense<0.000000e+00> : vector<16xf32>
    %55 = vector.multi_reduction <add>, %54, %cst_33 [0] : vector<8x16xf32> to vector<16xf32>
    %56 = vector.shape_cast %55 : vector<16xf32> to vector<1x16xf32>
    %c0_34 = arith.constant 0 : index
    %57 = memref.load %arg6[%c0_34] : memref<1xf32, #tpu.memory_space<smem>>
    %58 = vector.broadcast %57 : f32 to vector<1x16xf32>
    %59 = arith.addf %56, %58 : vector<1x16xf32>
    %cst_35 = arith.constant 0.000000e+00 : f32
    %60 = vector.broadcast %cst_35 : f32 to vector<8x16xf32>
    %c0_36 = arith.constant 0 : index
    %c3 = arith.constant 3 : index
    %61 = vector.load %arg10[%c0_36, %c3] : memref<4x24xbf16, #tpu.memory_space<vmem>>, vector<4x16xbf16>
    %c0_37 = arith.constant 0 : index
    %c0_38 = arith.constant 0 : index
    %c0_39 = arith.constant 0 : index
    %62 = vector.load %arg7[%c0_37, %c0_38, %c0_39] : memref<3x8x4xbf16, #tpu.memory_space<vmem>>, vector<1x8x4xbf16>
    %63 = vector.shape_cast %62 : vector<1x8x4xbf16> to vector<8x4xbf16>
    %cst_40 = arith.constant dense<0.000000e+00> : vector<8x16xf32>
    %64 = tpu.matmul %63, %61, %cst_40 {dimension_numbers = #tpu.dot_dimension_numbers<[1], [0], [0], [1], [0, 0, 1, 1], [], []>} : vector<8x4xbf16>, vector<4x16xbf16>, vector<8x16xf32> -> vector<8x16xf32>
    %65 = arith.addf %60, %64 : vector<8x16xf32>
    %c0_41 = arith.constant 0 : index
    %c4_42 = arith.constant 4 : index
    %66 = vector.load %arg10[%c0_41, %c4_42] : memref<4x24xbf16, #tpu.memory_space<vmem>>, vector<4x16xbf16>
    %c1_43 = arith.constant 1 : index
    %c0_44 = arith.constant 0 : index
    %c0_45 = arith.constant 0 : index
    %67 = vector.load %arg7[%c1_43, %c0_44, %c0_45] : memref<3x8x4xbf16, #tpu.memory_space<vmem>>, vector<1x8x4xbf16>
    %68 = vector.shape_cast %67 : vector<1x8x4xbf16> to vector<8x4xbf16>
    %cst_46 = arith.constant dense<0.000000e+00> : vector<8x16xf32>
    %69 = tpu.matmul %68, %66, %cst_46 {dimension_numbers = #tpu.dot_dimension_numbers<[1], [0], [0], [1], [0, 0, 1, 1], [], []>} : vector<8x4xbf16>, vector<4x16xbf16>, vector<8x16xf32> -> vector<8x16xf32>
    %70 = arith.addf %65, %69 : vector<8x16xf32>
    %c0_47 = arith.constant 0 : index
    %c5 = arith.constant 5 : index
    %71 = vector.load %arg10[%c0_47, %c5] : memref<4x24xbf16, #tpu.memory_space<vmem>>, vector<4x16xbf16>
    %c2_48 = arith.constant 2 : index
    %c0_49 = arith.constant 0 : index
    %c0_50 = arith.constant 0 : index
    %72 = vector.load %arg7[%c2_48, %c0_49, %c0_50] : memref<3x8x4xbf16, #tpu.memory_space<vmem>>, vector<1x8x4xbf16>
    %73 = vector.shape_cast %72 : vector<1x8x4xbf16> to vector<8x4xbf16>
    %cst_51 = arith.constant dense<0.000000e+00> : vector<8x16xf32>
    %74 = tpu.matmul %73, %71, %cst_51 {dimension_numbers = #tpu.dot_dimension_numbers<[1], [0], [0], [1], [0, 0, 1, 1], [], []>} : vector<8x4xbf16>, vector<4x16xbf16>, vector<8x16xf32> -> vector<8x16xf32>
    %75 = arith.addf %70, %74 : vector<8x16xf32>
    %c0_52 = arith.constant 0 : index
    %c0_53 = arith.constant 0 : index
    %76 = vector.load %arg8[%c0_52, %c0_53] : memref<8x1xf32, #tpu.memory_space<vmem>>, vector<8x1xf32>
    %77 = vector.broadcast %76 : vector<8x1xf32> to vector<8x16xf32>
    %78 = arith.addf %75, %77 : vector<8x16xf32>
    %79 = vector.broadcast %59 : vector<1x16xf32> to vector<8x16xf32>
    %80 = arith.addf %79, %78 : vector<8x16xf32>
    %cst_54 = arith.constant 0.000000e+00 : f32
    %81 = vector.broadcast %cst_54 : f32 to vector<8x16xf32>
    %82 = arith.maximumf %80, %81 : vector<8x16xf32>
    %c0_55 = arith.constant 0 : index
    %c0_56 = arith.constant 0 : index
    %c0_57 = arith.constant 0 : index
    %83 = vector.load %arg9[%c0_55, %c0_56, %c0_57] : memref<1x8x16xf32, #tpu.memory_space<vmem>>, vector<1x8x16xf32>
    %84 = vector.shape_cast %83 : vector<1x8x16xf32> to vector<8x16xf32>
    %85 = vector.shape_cast %82 : vector<8x16xf32> to vector<1x8x16xf32>
    tpu.vector_store %arg9[%c0_55, %c0_56, %c0_57], %85 {strides = array<i32>} : memref<1x8x16xf32, #tpu.memory_space<vmem>>, vector<1x8x16xf32>,
    return
  }
  func.func @transform_0(%arg0: i32, %arg1: i32) -> (i32, i32, i32) {
    %c0_i32 = arith.constant 0 : i32
    %c0_i32_0 = arith.constant 0 : i32
    %c0_i32_1 = arith.constant 0 : i32
    return %arg0, %c0_i32, %c0_i32_0 : i32, i32, i32
  }
  func.func @transform_1(%arg0: i32, %arg1: i32) -> (i32, i32, i32) {
    %c0_i32 = arith.constant 0 : i32
    %c0_i32_0 = arith.constant 0 : i32
    %c0_i32_1 = arith.constant 0 : i32
    %c0_i32_2 = arith.constant 0 : i32
    return %c0_i32, %c0_i32_0, %c0_i32_1 : i32, i32, i32
  }
  func.func @transform_2(%arg0: i32, %arg1: i32) -> (i32, i32) {
    %c0_i32 = arith.constant 0 : i32
    %c0_i32_0 = arith.constant 0 : i32
    %c0_i32_1 = arith.constant 0 : i32
    return %c0_i32, %c0_i32_0 : i32, i32
  }
  func.func @transform_3(%arg0: i32, %arg1: i32) -> (i32, i32) {
    %c0_i32 = arith.constant 0 : i32
    %c0_i32_0 = arith.constant 0 : i32
    %c0_i32_1 = arith.constant 0 : i32
    return %c0_i32, %c0_i32_0 : i32, i32
  }
  func.func @transform_4(%arg0: i32, %arg1: i32) -> i32 {
    %c0_i32 = arith.constant 0 : i32
    %c0_i32_0 = arith.constant 0 : i32
    return %c0_i32 : i32
  }
  func.func @transform_5(%arg0: i32, %arg1: i32) -> (i32, i32, i32) {
    %c0_i32 = arith.constant 0 : i32
    %c0_i32_0 = arith.constant 0 : i32
    %c0_i32_1 = arith.constant 0 : i32
    %c0_i32_2 = arith.constant 0 : i32
    return %c0_i32, %c0_i32_0, %c0_i32_1 : i32, i32, i32
  }
  func.func @transform_6(%arg0: i32, %arg1: i32) -> (i32, i32) {
    %c0_i32 = arith.constant 0 : i32
    %c0_i32_0 = arith.constant 0 : i32
    %c0_i32_1 = arith.constant 0 : i32
    return %c0_i32, %c0_i32_0 : i32, i32
  }
  func.func @transform_7(%arg0: i32, %arg1: i32) -> (i32, i32, i32) {
    %c0_i32 = arith.constant 0 : i32
    %c0_i32_0 = arith.constant 0 : i32
    return %arg0, %c0_i32, %arg1 : i32, i32, i32
  }
}

</mosaic_0001>

<llo_original>
// kernel: tpu_custom_call.1
$region0: #{tpu_custom_call.1}
  #allocation0 [shape = 'u32[]', space=smem, size = 0x4, offset = 0x4, fixed_abs, tag = 'smem constant byte address 0x4 - core index']
  #allocation1 [shape = 'u32[144,128]{1,0:T(1,128)}', space=vmem, size = 0x12000, scoped, tag = 'internal scratch']
  #allocation2 [shape = 'bf16[4,24]{1,0:T(4,128)(2,1)}', space=vmem, size = 0x400, scoped, tag = 'scratch operand']
  #allocation3 [shape = 'f32[1]{0:T(128)S(6)}', space=smem, size = 0x200, scoped, tag = 'scoped memory for tpu_custom_call.1']
  %s0 = inlined_call_operand.vmem [shape: f32[2,4,16], index: 0, kind: input, shape index: {}]
  %s1 = inlined_call_operand.vmem [shape: bf16[3,8,4], index: 1, kind: input, shape index: {}]
  %s2 = inlined_call_operand.vmem [shape: f32[8,1], index: 2, kind: input, shape index: {}]
  %s3 = inlined_call_operand.vmem [shape: f32[8,3], index: 3, kind: input, shape index: {}]
  %s4 = inlined_call_operand.<no memory space> [shape: f32[1], index: 4, kind: input, shape index: {}]
  %s5 = inlined_call_operand.vmem [shape: bf16[3,8,4], index: 5, kind: input, shape index: {}]
  %s6 = inlined_call_operand.vmem [shape: f32[8,1], index: 6, kind: input, shape index: {}]
  %s7 = inlined_call_operand.hbm [shape: f32[2,8,16], index: 7, kind: output, shape index: {}]
  %s8 = sld [smem:[#allocation0]]
  $region61: #{tpu_custom_call.1} parent=0
    _
  %s10 = ssub.s32 1, %s8
  %s11 = scalar_select 0, %s10, %s8
  %12 = sst [smem:[#allocation3]] %s4
  $region1: #{tpu_custom_call.1} parent=0
    #allocation4 [shape = 'u8[8192]{0}', space=vmem, size = 0x2000, scoped, tag = 'output window, operand 0']
    #allocation5 [shape = 's32[2]{0}', space=sflag, size = 0x8, scoped, tag = 'scoped memory for tpu_custom_call.1']
    %13 = vsyncpa [#allocation5], 0
    %s14 = scalar_lea.sflag [#allocation5], 1
    %15 = vsyncpa %s14, 0
    loop: start=0, step=1, limit=4
    $region2: #{tpu_custom_call.1} parent=1 // loop_pre_header
      _
    $region3: #{tpu_custom_call.1} parent=1 // loop_header
      %s17 = sphi 0, %s21
      %p18 = scmp.ge.s32.totalorder %s17, 4
      %s24 = sphi 0, %s36
      %s25 = sphi 0, %s32
      %s26 = sphi 0, %s24
      %s27 = sphi 0, %s25
      %s28 = sphi 0, %s26
      %s29 = sphi 0, %s27
      %s39 = sphi 0, %s41
      %s42 = sphi 0, %s39
      %s43 = sphi 0, %s42
      %s59 = sphi 0, %s43
      %s63 = sphi 0, %s63
      %s65 = sphi 0, %s63
      %s66 = sphi 0, %s65
      %s80 = sphi 0, %s66
      %s84 = sphi 0, %s84
      %s86 = sphi 0, %s84
      %s87 = sphi 0, %s86
      %s101 = sphi 0, %s87
      %s105 = sphi 0, %s105
      %s107 = sphi 0, %s105
      %s108 = sphi 0, %s107
      %s122 = sphi 0, %s108
      %s126 = sphi 0, %s126
      %s128 = sphi 0, %s126
      %s129 = sphi 0, %s128
      %s143 = sphi 0, %s129
      %s147 = sphi 0, %s147
      %s149 = sphi 0, %s147
      %s150 = sphi 0, %s149
      %s164 = sphi 0, %s150
      %s168 = sphi 0, %s168
      %s170 = sphi 0, %s168
      %s171 = sphi 0, %s170
      %s185 = sphi 0, %s171
      %s193 = sphi 0, %s195
      %s196 = sphi 0, %s193
      %s197 = sphi 0, %s196
      %s213 = sphi 0, %s197
    $region4: #{tpu_custom_call.1} parent=1 // loop_header_branch
      %20 = sbr.rel (%p18) target = $region8
    $region5: #{tpu_custom_call.1} parent=1 // loop_body
      %s22 = ssub.s32 %s17, 1
      %s23 = ssub.s32 %s17, 2
      %s30 = sadd.s32 1, %s25
      %p31 = scmp.ge.s32.totalorder %s30, 1
      %s32 = scalar_select %p31, 0, %s30
      %s33 = sadd.s32 1, %s24
      %s34 = scalar_select %p31, %s33, %s24
      %p35 = scmp.ge.s32.totalorder %s34, 2
      %s36 = scalar_select %p35, 0, %s34
      %s37 = ssub.s32 %s24, %s36
      %p38 = scmp.eq.s32.totalorder %s37, 0
      %s40 = sadd.s32 %s39, 1
      %s41 = scalar_select %p38, %s39, %s40
      %p44 = pneg %p38
      %p45 = scmp.eq.s32.totalorder %s17, 1
      %p46 = por %p44, %p45
      %p47 = scmp.ne.s32.totalorder %s39, %s42
      %p48 = scmp.eq.s32.totalorder %s17, 0
      %p49 = por %p47, %p48
      %p50 = scmp.ne.s32.totalorder %s39, %s42
      %p51 = scmp.eq.s32.totalorder %s22, 1
      %p52 = por %p50, %p51
      %p53 = scmp.ne.s32.totalorder %s42, %s43
      %p54 = scmp.eq.s32.totalorder %s22, 0
      %p55 = por %p53, %p54
      %p56 = scmp.ne.s32.totalorder %s42, %s43
      %p57 = scmp.eq.s32.totalorder %s23, 1
      %p58 = por %p56, %p57
      %p60 = scmp.ne.s32.totalorder %s43, %s59
      %p61 = scmp.eq.s32.totalorder %s23, 0
      %p62 = por %p60, %p61
      %s64 = sadd.s32 %s63, 1
      %p67 = scmp.eq.s32.totalorder %s17, 1
      %p68 = scmp.ne.s32.totalorder %s63, %s65
      %p69 = scmp.eq.s32.totalorder %s17, 0
      %p70 = por %p68, %p69
      %p71 = scmp.ne.s32.totalorder %s63, %s65
      %p72 = scmp.eq.s32.totalorder %s22, 1
      %p73 = por %p71, %p72
      %p74 = scmp.ne.s32.totalorder %s65, %s66
      %p75 = scmp.eq.s32.totalorder %s22, 0
      %p76 = por %p74, %p75
      %p77 = scmp.ne.s32.totalorder %s65, %s66
      %p78 = scmp.eq.s32.totalorder %s23, 1
      %p79 = por %p77, %p78
      %p81 = scmp.ne.s32.totalorder %s66, %s80
      %p82 = scmp.eq.s32.totalorder %s23, 0
      %p83 = por %p81, %p82
      %s85 = sadd.s32 %s84, 1
      %p88 = scmp.eq.s32.totalorder %s17, 1
      %p89 = scmp.ne.s32.totalorder %s84, %s86
      %p90 = scmp.eq.s32.totalorder %s17, 0
      %p91 = por %p89, %p90
      %p92 = scmp.ne.s32.totalorder %s84, %s86
      %p93 = scmp.eq.s32.totalorder %s22, 1
      %p94 = por %p92, %p93
      %p95 = scmp.ne.s32.totalorder %s86, %s87
      %p96 = scmp.eq.s32.totalorder %s22, 0
      %p97 = por %p95, %p96
      %p98 = scmp.ne.s32.totalorder %s86, %s87
      %p99 = scmp.eq.s32.totalorder %s23, 1
      %p100 = por %p98, %p99
      %p102 = scmp.ne.s32.totalorder %s87, %s101
      %p103 = scmp.eq.s32.totalorder %s23, 0
      %p104 = por %p102, %p103
      %s106 = sadd.s32 %s105, 1
      %p109 = scmp.eq.s32.totalorder %s17, 1
      %p110 = scmp.ne.s32.totalorder %s105, %s107
      %p111 = scmp.eq.s32.totalorder %s17, 0
      %p112 = por %p110, %p111
      %p113 = scmp.ne.s32.totalorder %s105, %s107
      %p114 = scmp.eq.s32.totalorder %s22, 1
      %p115 = por %p113, %p114
      %p116 = scmp.ne.s32.totalorder %s107, %s108
      %p117 = scmp.eq.s32.totalorder %s22, 0
      %p118 = por %p116, %p117
      %p119 = scmp.ne.s32.totalorder %s107, %s108
      %p120 = scmp.eq.s32.totalorder %s23, 1
      %p121 = por %p119, %p120
      %p123 = scmp.ne.s32.totalorder %s108, %s122
      %p124 = scmp.eq.s32.totalorder %s23, 0
      %p125 = por %p123, %p124
      %s127 = sadd.s32 %s126, 1
      %p130 = scmp.eq.s32.totalorder %s17, 1
      %p131 = scmp.ne.s32.totalorder %s126, %s128
      %p132 = scmp.eq.s32.totalorder %s17, 0
      %p133 = por %p131, %p132
      %p134 = scmp.ne.s32.totalorder %s126, %s128
      %p135 = scmp.eq.s32.totalorder %s22, 1
      %p136 = por %p134, %p135
      %p137 = scmp.ne.s32.totalorder %s128, %s129
      %p138 = scmp.eq.s32.totalorder %s22, 0
      %p139 = por %p137, %p138
      %p140 = scmp.ne.s32.totalorder %s128, %s129
      %p141 = scmp.eq.s32.totalorder %s23, 1
      %p142 = por %p140, %p141
      %p144 = scmp.ne.s32.totalorder %s129, %s143
      %p145 = scmp.eq.s32.totalorder %s23, 0
      %p146 = por %p144, %p145
      %s148 = sadd.s32 %s147, 1
      %p151 = scmp.eq.s32.totalorder %s17, 1
      %p152 = scmp.ne.s32.totalorder %s147, %s149
      %p153 = scmp.eq.s32.totalorder %s17, 0
      %p154 = por %p152, %p153
      %p155 = scmp.ne.s32.totalorder %s147, %s149
      %p156 = scmp.eq.s32.totalorder %s22, 1
      %p157 = por %p155, %p156
      %p158 = scmp.ne.s32.totalorder %s149, %s150
      %p159 = scmp.eq.s32.totalorder %s22, 0
      %p160 = por %p158, %p159
      %p161 = scmp.ne.s32.totalorder %s149, %s150
      %p162 = scmp.eq.s32.totalorder %s23, 1
      %p163 = por %p161, %p162
      %p165 = scmp.ne.s32.totalorder %s150, %s164
      %p166 = scmp.eq.s32.totalorder %s23, 0
      %p167 = por %p165, %p166
      %s169 = sadd.s32 %s168, 1
      %p172 = scmp.eq.s32.totalorder %s17, 1
      %p173 = scmp.ne.s32.totalorder %s168, %s170
      %p174 = scmp.eq.s32.totalorder %s17, 0
      %p175 = por %p173, %p174
      %p176 = scmp.ne.s32.totalorder %s168, %s170
      %p177 = scmp.eq.s32.totalorder %s22, 1
      %p178 = por %p176, %p177
      %p179 = scmp.ne.s32.totalorder %s170, %s171
      %p180 = scmp.eq.s32.totalorder %s22, 0
      %p181 = por %p179, %p180
      %p182 = scmp.ne.s32.totalorder %s170, %s171
      %p183 = scmp.eq.s32.totalorder %s23, 1
      %p184 = por %p182, %p183
      %p186 = scmp.ne.s32.totalorder %s171, %s185
      %p187 = scmp.eq.s32.totalorder %s23, 0
      %p188 = por %p186, %p187
      %s189 = ssub.s32 %s24, %s36
      %s190 = ssub.s32 %s25, %s32
      %s191 = sor.u32 %s189, %s190
      %p192 = scmp.eq.s32.totalorder %s191, 0
      %s194 = sadd.s32 %s193, 1
      %s195 = scalar_select %p192, %s193, %s194
      %p198 = pneg %p192
      %p199 = scmp.eq.s32.totalorder %s17, 1
      %p200 = por %p198, %p199
      %p201 = scmp.ne.s32.totalorder %s193, %s196
      %p202 = scmp.eq.s32.totalorder %s17, 0
      %p203 = por %p201, %p202
      %p204 = scmp.ne.s32.totalorder %s193, %s196
      %p205 = scmp.eq.s32.totalorder %s22, 1
      %p206 = por %p204, %p205
      %p207 = scmp.ne.s32.totalorder %s196, %s197
      %p208 = scmp.eq.s32.totalorder %s22, 0
      %p209 = por %p207, %p208
      %p210 = scmp.ne.s32.totalorder %s196, %s197
      %p211 = scmp.eq.s32.totalorder %s23, 1
      %p212 = por %p210, %p211
      %p214 = scmp.ne.s32.totalorder %s197, %s213
      %p215 = scmp.eq.s32.totalorder %s23, 0
      %p216 = por %p214, %p215
      %p217 = scmp.le.s32.totalorder 1, %s17
      %p218 = scmp.lt.s32.totalorder %s17, 3
      %p219 = pnand %p217, %p218
      %p220 = pneg %p219
      // Predicated region
      $region9: #{tpu_custom_call.1} parent=5 // pred_check
        _
      $region10: #{tpu_custom_call.1} parent=5 // pred_check_branch
        %222 = sbr.rel (%p219) target = $region12
      $region11: #{tpu_custom_call.1} parent=5 // pred_region
        %s223 = ssub.s32 %s17, 1
        // Predicated region
        $region13: #{tpu_custom_call.1} parent=11 // pred_check
          %p224 = pneg %p76
        $region14: #{tpu_custom_call.1} parent=11 // pred_check_branch
          %226 = sbr.rel (%p224) target = $region16
        $region15: #{tpu_custom_call.1} parent=11 // pred_region
          _
        $region16: #{tpu_custom_call.1} parent=11 // pred_fallthru
          _
        // Predicated region
        $region17: #{tpu_custom_call.1} parent=11 // pred_check
          %p227 = pneg %p97
        $region18: #{tpu_custom_call.1} parent=11 // pred_check_branch
          %229 = sbr.rel (%p227) target = $region20
        $region19: #{tpu_custom_call.1} parent=11 // pred_region
          _
        $region20: #{tpu_custom_call.1} parent=11 // pred_fallthru
          _
        // Predicated region
        $region21: #{tpu_custom_call.1} parent=11 // pred_check
          %p230 = pneg %p118
        $region22: #{tpu_custom_call.1} parent=11 // pred_check_branch
          %232 = sbr.rel (%p230) target = $region24
        $region23: #{tpu_custom_call.1} parent=11 // pred_region
          _
        $region24: #{tpu_custom_call.1} parent=11 // pred_fallthru
          _
        // Predicated region
        $region25: #{tpu_custom_call.1} parent=11 // pred_check
          %p233 = pneg %p139
        $region26: #{tpu_custom_call.1} parent=11 // pred_check_branch
          %235 = sbr.rel (%p233) target = $region28
        $region27: #{tpu_custom_call.1} parent=11 // pred_region
          _
        $region28: #{tpu_custom_call.1} parent=11 // pred_fallthru
          _
        // Predicated region
        $region29: #{tpu_custom_call.1} parent=11 // pred_check
          %p236 = pneg %p160
        $region30: #{tpu_custom_call.1} parent=11 // pred_check_branch
          %238 = sbr.rel (%p236) target = $region32
        $region31: #{tpu_custom_call.1} parent=11 // pred_region
          _
        $region32: #{tpu_custom_call.1} parent=11 // pred_fallthru
          _
        // Predicated region
        $region33: #{tpu_custom_call.1} parent=11 // pred_check
          %p239 = pneg %p181
        $region34: #{tpu_custom_call.1} parent=11 // pred_check_branch
          %241 = sbr.rel (%p239) target = $region36
        $region35: #{tpu_custom_call.1} parent=11 // pred_region
          _
        $region36: #{tpu_custom_call.1} parent=11 // pred_fallthru
          _
      $region12: #{tpu_custom_call.1} parent=5 // pred_fallthru
        _
      %p242 = scmp.lt.s32.totalorder %s17, 2
      // Predicated region
      $region37: #{tpu_custom_call.1} parent=5 // pred_check
        %p243 = pneg %p242
      $region38: #{tpu_custom_call.1} parent=5 // pred_check_branch
        %245 = sbr.rel (%p243) target = $region40
      $region39: #{tpu_custom_call.1} parent=5 // pred_region
        // Predicated region
        $region41: #{tpu_custom_call.1} parent=39 // pred_check
          %p246 = pneg %p49
        $region42: #{tpu_custom_call.1} parent=39 // pred_check_branch
          %248 = sbr.rel (%p246) target = $region44
        $region43: #{tpu_custom_call.1} parent=39 // pred_region
          %p249 = scmp.lt.s32.totalorder %s24, 1
          %s250 = scalar_select %p249, %s24, 1
          %s251 = smul.addr %s250, 4
          %s252 = scalar_lea.vmem %s0, %s251
        $region44: #{tpu_custom_call.1} parent=39 // pred_fallthru
          _
      $region40: #{tpu_custom_call.1} parent=5 // pred_fallthru
        _
      %p253 = scmp.le.s32.totalorder 1, %s17
      %p254 = scmp.lt.s32.totalorder %s17, 3
      %p255 = pnand %p253, %p254
      %p256 = pneg %p255
      // Predicated region
      $region45: #{tpu_custom_call.1} parent=5 // pred_check
        _
      $region46: #{tpu_custom_call.1} parent=5 // pred_check_branch
        %258 = sbr.rel (%p255) target = $region48
      $region47: #{tpu_custom_call.1} parent=5 // pred_region
        %s259 = ssub.s32 %s17, 1
        %p260 = scmp.lt.s32.totalorder %s26, 1
        %s261 = scalar_select %p260, %s26, 1
        %s262 = smul.addr %s261, 4
        %s263 = scalar_lea.vmem %s0, %s262
        %p264 = pneg %p55
        %p265 = pneg %p52
        %p266 = pneg %p76
        %p267 = pneg %p73
        %p268 = pneg %p97
        %p269 = pneg %p94
        %p270 = pneg %p118
        %p271 = pneg %p115
        %p272 = pneg %p139
        %p273 = pneg %p136
        %p274 = pneg %p160
        %p275 = pneg %p157
        %p276 = pneg %p181
        %p277 = pneg %p178
        %p278 = pneg %p209
        %p279 = pneg %p206
        %s280 = sand.u32 %s196, 1
        %s281 = scalar_lea.sflag [#allocation5], %s280
        %s282 = sand.u32 %s196, 1
        %s283 = smul.addr %s282, 8
        %s284 = scalar_lea.vmem [#allocation4], %s283
        %p285 = scmp.lt.s32.totalorder %s26, 1
        %s286 = scalar_select %p285, %s26, 1
        %s287 = smul.addr %s286, 4
        %s288 = scalar_lea.vmem %s0, %s287
        %vm290 = vcmask 189440
        %291 = vst.msk [vmem:[#allocation2] sm:$0x3] %vm290, 0
        %v292 = vld [vmem:[%s288] sm:$0xf]
        %v293 = vpack.c.bf16 %v292, %v292
        %v296 = vunpack.c.l.s4 1983009808
        %v297 = vunpack.c.0.s8 %v296
        %v298 = vlaneseq
        %v299 = vshrl.u32 %v298, 7
        %v300 = vsub.s32 %v297, %v299
        %v301 = vrot.slane %v293, %v300
        %302 = vrot.lane.b32.xlu0 %v301, 4
        %v303 = vpop.permute.xlu0 %302
        %vm305 = vcmask 156704
        %306 = vst.msk [vmem:[#allocation2] sm:$0x3] %vm305, %v303
        %v307 = vld [vmem:[#allocation2] sm:$0x3]
        %v308 = vld [vmem:[%s1] sm:$0xf]
        %s309 = scalar_lea.vmem %s1, 4
        %v310 = vld [vmem:[%s309] sm:$0xf]
        %v313 = vunpack.c.l.s4 1983009808
        %v314 = vunpack.c.0.s8 %v313
        %v315 = vlaneseq
        %v316 = vshrl.u32 %v315, 7
        %v317 = vsub.s32 %v314, %v316
        %v318 = vrot.slane %v307, %v317
        %319 = vrot.lane.b32.xlu0 %v318, 126
        %v320 = vpop.permute.xlu0 %319
        %vm321 = vcmask 31744
        %v323 = vsel %vm321, %v310, 0
        %vm325 = vcmask 1041408
        %v327 = vsel %vm325, %v320, 0
        %329 = vmatprep.subr.bf16.mxu0 0
        %330 = vmatpush1.bf16.msra.mxu0 %v327
        %331 = vmatprep.subr.bf16.mxu0 0
        %332 = vmatpush1.bf16.msra.mxu0 0
        %333 = vmatprep.subr.bf16.mxu0 0
        %334 = vmatpush1.bf16.msra.mxu0 0
        %335 = vmatprep.subr.bf16.mxu0 0
        %336 = vmatpush1.bf16.msra.mxu0 0
        %337 = vmatprep.subr.bf16.mxu0 0
        %338 = vmatpush1.bf16.msra.mxu0 0
        %339 = vmatprep.subr.bf16.mxu0 0
        %340 = vmatpush1.bf16.msra.mxu0 0
        %341 = vmatprep.subr.bf16.mxu0 0
        %342 = vmatpush1.bf16.msra.mxu0 0
        %343 = vmatprep.subr.bf16.mxu0 0
        %344 = vmatpush1.bf16.msra.mxu0 0
        %345 = vmatprep.subr.bf16.mxu0 0
        %346 = vmatpush1.bf16.msra.mxu0 0
        %347 = vmatprep.subr.bf16.mxu0 0
        %348 = vmatpush1.bf16.msra.mxu0 0
        %349 = vmatprep.subr.bf16.mxu0 0
        %350 = vmatpush1.bf16.msra.mxu0 0
        %351 = vmatprep.subr.bf16.mxu0 0
        %352 = vmatpush1.bf16.msra.mxu0 0
        %353 = vmatprep.subr.bf16.mxu0 0
        %354 = vmatpush1.bf16.msra.mxu0 0
        %355 = vmatprep.subr.bf16.mxu0 0
        %356 = vmatpush1.bf16.msra.mxu0 0
        %357 = vmatprep.subr.bf16.mxu0 0
        %358 = vmatpush1.bf16.msra.mxu0 0
        %359 = vmatprep.subr.bf16.mxu0 0
        %360 = vmatpush1.bf16.msra.mxu0 0
        %361 = vmatprep.mubr.bf16.mxu0 0
        %362 = vmatmul.mubr.bf16.gmra.mrb[0].mxu0 %v323
        %v363 = vpop.f32.mrb[0].mxu0
        %v364 = vadd.f32 0.0, %v363
        %v365 = vpop.f32.mrb[0].mxu0
        %v366 = vpop.f32.mrb[0].mxu0
        %v367 = vpop.f32.mrb[0].mxu0
        %368 = vdwg.mxu0
        %v370 = vsel %vm321, %v308, 0
        %v373 = vsel %vm325, %v307, 0
        %375 = vmatprep.subr.bf16.mxu0 0
        %376 = vmatpush1.bf16.msra.mxu0 %v373
        %377 = vmatprep.subr.bf16.mxu0 0
        %378 = vmatpush1.bf16.msra.mxu0 0
        %379 = vmatprep.subr.bf16.mxu0 0
        %380 = vmatpush1.bf16.msra.mxu0 0
        %381 = vmatprep.subr.bf16.mxu0 0
        %382 = vmatpush1.bf16.msra.mxu0 0
        %383 = vmatprep.subr.bf16.mxu0 0
        %384 = vmatpush1.bf16.msra.mxu0 0
        %385 = vmatprep.subr.bf16.mxu0 0
        %386 = vmatpush1.bf16.msra.mxu0 0
        %387 = vmatprep.subr.bf16.mxu0 0
        %388 = vmatpush1.bf16.msra.mxu0 0
        %389 = vmatprep.subr.bf16.mxu0 0
        %390 = vmatpush1.bf16.msra.mxu0 0
        %391 = vmatprep.subr.bf16.mxu0 0
        %392 = vmatpush1.bf16.msra.mxu0 0
        %393 = vmatprep.subr.bf16.mxu0 0
        %394 = vmatpush1.bf16.msra.mxu0 0
        %395 = vmatprep.subr.bf16.mxu0 0
        %396 = vmatpush1.bf16.msra.mxu0 0
        %397 = vmatprep.subr.bf16.mxu0 0
        %398 = vmatpush1.bf16.msra.mxu0 0
        %399 = vmatprep.subr.bf16.mxu0 0
        %400 = vmatpush1.bf16.msra.mxu0 0
        %401 = vmatprep.subr.bf16.mxu0 0
        %402 = vmatpush1.bf16.msra.mxu0 0
        %403 = vmatprep.subr.bf16.mxu0 0
        %404 = vmatpush1.bf16.msra.mxu0 0
        %405 = vmatprep.subr.bf16.mxu0 0
        %406 = vmatpush1.bf16.msra.mxu0 0
        %407 = vmatprep.mubr.bf16.mxu0 0
        %408 = vmatmul.mubr.bf16.gmra.mrb[0].mxu0 %v370
        %v409 = vpop.f32.mrb[0].mxu0
        %v410 = vadd.f32 %v364, %v409
        %v411 = vpop.f32.mrb[0].mxu0
        %v412 = vpop.f32.mrb[0].mxu0
        %v413 = vpop.f32.mrb[0].mxu0
        %414 = vdwg.mxu0
        %v415 = vld [vmem:[#allocation2] sm:$0x3]
        %s416 = scalar_lea.vmem %s1, 8
        %v417 = vld [vmem:[%s416] sm:$0xf]
        %v420 = vunpack.c.l.s4 1983009808
        %v421 = vunpack.c.0.s8 %v420
        %v422 = vlaneseq
        %v423 = vshrl.u32 %v422, 7
        %v424 = vsub.s32 %v421, %v423
        %v425 = vrot.slane %v415, %v424
        %426 = vrot.lane.b32.xlu0 %v425, 124
        %v427 = vpop.permute.xlu0 %426
        %v429 = vsel %vm321, %v417, 0
        %v432 = vsel %vm325, %v427, 0
        %434 = vmatprep.subr.bf16.mxu0 0
        %435 = vmatpush1.bf16.msra.mxu0 %v432
        %436 = vmatprep.subr.bf16.mxu0 0
        %437 = vmatpush1.bf16.msra.mxu0 0
        %438 = vmatprep.subr.bf16.mxu0 0
        %439 = vmatpush1.bf16.msra.mxu0 0
        %440 = vmatprep.subr.bf16.mxu0 0
        %441 = vmatpush1.bf16.msra.mxu0 0
        %442 = vmatprep.subr.bf16.mxu0 0
        %443 = vmatpush1.bf16.msra.mxu0 0
        %444 = vmatprep.subr.bf16.mxu0 0
        %445 = vmatpush1.bf16.msra.mxu0 0
        %446 = vmatprep.subr.bf16.mxu0 0
        %447 = vmatpush1.bf16.msra.mxu0 0
        %448 = vmatprep.subr.bf16.mxu0 0
        %449 = vmatpush1.bf16.msra.mxu0 0
        %450 = vmatprep.subr.bf16.mxu0 0
        %451 = vmatpush1.bf16.msra.mxu0 0
        %452 = vmatprep.subr.bf16.mxu0 0
        %453 = vmatpush1.bf16.msra.mxu0 0
        %454 = vmatprep.subr.bf16.mxu0 0
        %455 = vmatpush1.bf16.msra.mxu0 0
        %456 = vmatprep.subr.bf16.mxu0 0
        %457 = vmatpush1.bf16.msra.mxu0 0
        %458 = vmatprep.subr.bf16.mxu0 0
        %459 = vmatpush1.bf16.msra.mxu0 0
        %460 = vmatprep.subr.bf16.mxu0 0
        %461 = vmatpush1.bf16.msra.mxu0 0
        %462 = vmatprep.subr.bf16.mxu0 0
        %463 = vmatpush1.bf16.msra.mxu0 0
        %464 = vmatprep.subr.bf16.mxu0 0
        %465 = vmatpush1.bf16.msra.mxu0 0
        %466 = vmatprep.mubr.bf16.mxu0 0
        %467 = vmatmul.mubr.bf16.gmra.mrb[0].mxu0 %v429
        %v468 = vpop.f32.mrb[0].mxu0
        %v469 = vadd.f32 0.0, %v468
        %v470 = vpop.f32.mrb[0].mxu0
        %v471 = vpop.f32.mrb[0].mxu0
        %v472 = vpop.f32.mrb[0].mxu0
        %473 = vdwg.mxu0
        %v474 = vadd.f32 %v410, %v469
        %v475 = vld [vmem:[%s2] sm:$0xff]
        %477 = vset.pattern.permute.xlu0 0
        %478 = vperm.xlu0 %477, %v475
        %v479 = vpop.permute.xlu0 %478
        %v481 = vadd.f32 %v474, %v479
        %v482 = vmax.f32 %v481, 0.0
        %v483 = vlaneseq
        %v484 = vand.u32 %v483, 127
        %v485 = vadd.s32 %v484, 4294967294
        %vm486 = vcmp.ge.s32.totalorder %v485, 0
        %vm487 = vcmp.lt.s32.totalorder %v485, 16
        %vm488 = vmand %vm486, %vm487
        %v489 = vsel %vm488, 1, 0
        %vm490 = vcmp.eq.s32.totalorder %v489, 1
        %v491 = vsel %vm490, %v482, 0.0
        %v492 = vld [vmem:[%s3] sm:$0xff]
        %494 = vset.pattern.permute.xlu0 0
        %495 = vperm.xlu0 %494, %v492
        %v496 = vpop.permute.xlu0 %495
        %v498 = vmul.f32 %v491, %v496
        %v499 = vadd.f32 %v498, 0.0
        %500 = vset.pattern.permute.xlu0 1
        %501 = vperm.xlu0 %500, %v492
        %v502 = vpop.permute.xlu0 %501
        %v504 = vmul.f32 %v491, %v502
        %506 = vrot.lane.b32.xlu0 %v504, 126
        %v507 = vpop.permute.xlu0 %506
        %v509 = vadd.f32 %v499, %v507
        %510 = vset.pattern.permute.xlu0 2
        %511 = vperm.xlu0 %510, %v492
        %v512 = vpop.permute.xlu0 %511
        %v514 = vmul.f32 %v491, %v512
        %516 = vrot.lane.b32.xlu0 %v514, 124
        %v517 = vpop.permute.xlu0 %516
        %v519 = vadd.f32 %v509, %v517
        %vm520 = vcmask 130048
        %v521 = vsel %vm520, %v519, 0.0
        %v522 = vrot.slane %v521, 4
        %v523 = vadd.f32 %v521, %v522
        %v524 = vrot.slane %v523, 2
        %v525 = vadd.f32 %v523, %v524
        %v526 = vrot.slane %v525, 1
        %v527 = vadd.f32 %v525, %v526
        %s528 = sld [smem:[#allocation3]]
        %v529 = vstv %s528
        %v530 = vadd.f32 %v527, %v529
        %v531 = vld [vmem:[#allocation2] sm:$0x3]
        %v532 = vld [vmem:[%s5] sm:$0xf]
        %s533 = scalar_lea.vmem %s5, 4
        %v534 = vld [vmem:[%s533] sm:$0xf]
        %v537 = vunpack.c.l.s4 1983009808
        %v538 = vunpack.c.0.s8 %v537
        %v539 = vlaneseq
        %v540 = vshrl.u32 %v539, 7
        %v541 = vsub.s32 %v538, %v540
        %v542 = vrot.slane %v531, %v541
        %543 = vrot.lane.b32.xlu0 %v542, 124
        %v544 = vpop.permute.xlu0 %543
        %v546 = vsel %vm321, %v534, 0
        %v549 = vsel %vm325, %v544, 0
        %551 = vmatprep.subr.bf16.mxu0 0
        %552 = vmatpush1.bf16.msra.mxu0 %v549
        %553 = vmatprep.subr.bf16.mxu0 0
        %554 = vmatpush1.bf16.msra.mxu0 0
        %555 = vmatprep.subr.bf16.mxu0 0
        %556 = vmatpush1.bf16.msra.mxu0 0
        %557 = vmatprep.subr.bf16.mxu0 0
        %558 = vmatpush1.bf16.msra.mxu0 0
        %559 = vmatprep.subr.bf16.mxu0 0
        %560 = vmatpush1.bf16.msra.mxu0 0
        %561 = vmatprep.subr.bf16.mxu0 0
        %562 = vmatpush1.bf16.msra.mxu0 0
        %563 = vmatprep.subr.bf16.mxu0 0
        %564 = vmatpush1.bf16.msra.mxu0 0
        %565 = vmatprep.subr.bf16.mxu0 0
        %566 = vmatpush1.bf16.msra.mxu0 0
        %567 = vmatprep.subr.bf16.mxu0 0
        %568 = vmatpush1.bf16.msra.mxu0 0
        %569 = vmatprep.subr.bf16.mxu0 0
        %570 = vmatpush1.bf16.msra.mxu0 0
        %571 = vmatprep.subr.bf16.mxu0 0
        %572 = vmatpush1.bf16.msra.mxu0 0
        %573 = vmatprep.subr.bf16.mxu0 0
        %574 = vmatpush1.bf16.msra.mxu0 0
        %575 = vmatprep.subr.bf16.mxu0 0
        %576 = vmatpush1.bf16.msra.mxu0 0
        %577 = vmatprep.subr.bf16.mxu0 0
        %578 = vmatpush1.bf16.msra.mxu0 0
        %579 = vmatprep.subr.bf16.mxu0 0
        %580 = vmatpush1.bf16.msra.mxu0 0
        %581 = vmatprep.subr.bf16.mxu0 0
        %582 = vmatpush1.bf16.msra.mxu0 0
        %583 = vmatprep.mubr.bf16.mxu0 0
        %584 = vmatmul.mubr.bf16.gmra.mrb[0].mxu0 %v546
        %v585 = vpop.f32.mrb[0].mxu0
        %v586 = vadd.f32 0.0, %v585
        %v587 = vpop.f32.mrb[0].mxu0
        %v588 = vpop.f32.mrb[0].mxu0
        %v589 = vpop.f32.mrb[0].mxu0
        %590 = vdwg.mxu0
        %591 = vrot.lane.b32.xlu0 %v542, 125
        %v592 = vpop.permute.xlu0 %591
        %v594 = vsel %vm321, %v532, 0
        %v597 = vsel %vm325, %v592, 0
        %599 = vmatprep.subr.bf16.mxu0 0
        %600 = vmatpush1.bf16.msra.mxu0 %v597
        %601 = vmatprep.subr.bf16.mxu0 0
        %602 = vmatpush1.bf16.msra.mxu0 0
        %603 = vmatprep.subr.bf16.mxu0 0
        %604 = vmatpush1.bf16.msra.mxu0 0
        %605 = vmatprep.subr.bf16.mxu0 0
        %606 = vmatpush1.bf16.msra.mxu0 0
        %607 = vmatprep.subr.bf16.mxu0 0
        %608 = vmatpush1.bf16.msra.mxu0 0
        %609 = vmatprep.subr.bf16.mxu0 0
        %610 = vmatpush1.bf16.msra.mxu0 0
        %611 = vmatprep.subr.bf16.mxu0 0
        %612 = vmatpush1.bf16.msra.mxu0 0
        %613 = vmatprep.subr.bf16.mxu0 0
        %614 = vmatpush1.bf16.msra.mxu0 0
        %615 = vmatprep.subr.bf16.mxu0 0
        %616 = vmatpush1.bf16.msra.mxu0 0
        %617 = vmatprep.subr.bf16.mxu0 0
        %618 = vmatpush1.bf16.msra.mxu0 0
        %619 = vmatprep.subr.bf16.mxu0 0
        %620 = vmatpush1.bf16.msra.mxu0 0
        %621 = vmatprep.subr.bf16.mxu0 0
        %622 = vmatpush1.bf16.msra.mxu0 0
        %623 = vmatprep.subr.bf16.mxu0 0
        %624 = vmatpush1.bf16.msra.mxu0 0
        %625 = vmatprep.subr.bf16.mxu0 0
        %626 = vmatpush1.bf16.msra.mxu0 0
        %627 = vmatprep.subr.bf16.mxu0 0
        %628 = vmatpush1.bf16.msra.mxu0 0
        %629 = vmatprep.subr.bf16.mxu0 0
        %630 = vmatpush1.bf16.msra.mxu0 0
        %631 = vmatprep.mubr.bf16.mxu0 0
        %632 = vmatmul.mubr.bf16.gmra.mrb[0].mxu0 %v594
        %v633 = vpop.f32.mrb[0].mxu0
        %v634 = vadd.f32 %v586, %v633
        %v635 = vpop.f32.mrb[0].mxu0
        %v636 = vpop.f32.mrb[0].mxu0
        %v637 = vpop.f32.mrb[0].mxu0
        %638 = vdwg.mxu0
        %v639 = vld [vmem:[#allocation2] sm:$0x3]
        %s640 = scalar_lea.vmem %s5, 8
        %v641 = vld [vmem:[%s640] sm:$0xf]
        %v644 = vunpack.c.l.s4 1983009808
        %v645 = vunpack.c.0.s8 %v644
        %v646 = vlaneseq
        %v647 = vshrl.u32 %v646, 7
        %v648 = vsub.s32 %v645, %v647
        %v649 = vrot.slane %v639, %v648
        %650 = vrot.lane.b32.xlu0 %v649, 123
        %v651 = vpop.permute.xlu0 %650
        %v653 = vsel %vm321, %v641, 0
        %v656 = vsel %vm325, %v651, 0
        %658 = vmatprep.subr.bf16.mxu0 0
        %659 = vmatpush1.bf16.msra.mxu0 %v656
        %660 = vmatprep.subr.bf16.mxu0 0
        %661 = vmatpush1.bf16.msra.mxu0 0
        %662 = vmatprep.subr.bf16.mxu0 0
        %663 = vmatpush1.bf16.msra.mxu0 0
        %664 = vmatprep.subr.bf16.mxu0 0
        %665 = vmatpush1.bf16.msra.mxu0 0
        %666 = vmatprep.subr.bf16.mxu0 0
        %667 = vmatpush1.bf16.msra.mxu0 0
        %668 = vmatprep.subr.bf16.mxu0 0
        %669 = vmatpush1.bf16.msra.mxu0 0
        %670 = vmatprep.subr.bf16.mxu0 0
        %671 = vmatpush1.bf16.msra.mxu0 0
        %672 = vmatprep.subr.bf16.mxu0 0
        %673 = vmatpush1.bf16.msra.mxu0 0
        %674 = vmatprep.subr.bf16.mxu0 0
        %675 = vmatpush1.bf16.msra.mxu0 0
        %676 = vmatprep.subr.bf16.mxu0 0
        %677 = vmatpush1.bf16.msra.mxu0 0
        %678 = vmatprep.subr.bf16.mxu0 0
        %679 = vmatpush1.bf16.msra.mxu0 0
        %680 = vmatprep.subr.bf16.mxu0 0
        %681 = vmatpush1.bf16.msra.mxu0 0
        %682 = vmatprep.subr.bf16.mxu0 0
        %683 = vmatpush1.bf16.msra.mxu0 0
        %684 = vmatprep.subr.bf16.mxu0 0
        %685 = vmatpush1.bf16.msra.mxu0 0
        %686 = vmatprep.subr.bf16.mxu0 0
        %687 = vmatpush1.bf16.msra.mxu0 0
        %688 = vmatprep.subr.bf16.mxu0 0
        %689 = vmatpush1.bf16.msra.mxu0 0
        %690 = vmatprep.mubr.bf16.mxu0 0
        %691 = vmatmul.mubr.bf16.gmra.mrb[0].mxu0 %v653
        %v692 = vpop.f32.mrb[0].mxu0
        %v693 = vadd.f32 0.0, %v692
        %v694 = vpop.f32.mrb[0].mxu0
        %v695 = vpop.f32.mrb[0].mxu0
        %v696 = vpop.f32.mrb[0].mxu0
        %697 = vdwg.mxu0
        %v698 = vadd.f32 %v634, %v693
        %v699 = vld [vmem:[%s6] sm:$0xff]
        %701 = vset.pattern.permute.xlu0 0
        %702 = vperm.xlu0 %701, %v699
        %v703 = vpop.permute.xlu0 %702
        %v705 = vadd.f32 %v698, %v703
        %v706 = vadd.f32 %v530, %v705
        %v707 = vmax.f32 %v706, 0.0
        %708 = vst.msk [vmem:[%s284] sm:$0xff] %vm520, %v707
        %s709 = sand.u32 %s196, 1
        %s710 = scalar_lea.sflag [#allocation5], %s709
        %s711 = sand.u32 %s196, 1
        %s712 = smul.addr %s711, 8
        %s713 = scalar_lea.vmem [#allocation4], %s712
        // Predicated region
        $region49: #{tpu_custom_call.1} parent=47 // pred_check
          %p714 = pneg %p206
        $region50: #{tpu_custom_call.1} parent=47 // pred_check_branch
          %716 = sbr.rel (%p714) target = $region52
        $region51: #{tpu_custom_call.1} parent=47 // pred_region
          %s718 = ssub.s32 128, 128
          %719 = vsyncadd %s710, %s718
          %s720 = sadd.s32 %s27, %s26
          %s721 = smul.addr %s720, 128
          %s722 = scalar_lea.hbm %s7, %s721
          %s724 = sshll.u32 %s713, 4
          %s725 = int_to_ptr.vmem [resolvable:$true] %s724
          %727 = dma.vmem_to_hbm [thread:$0]  %s725, 128, %s722, %s710
        $region52: #{tpu_custom_call.1} parent=47 // pred_fallthru
          _
      $region48: #{tpu_custom_call.1} parent=5 // pred_fallthru
        _
      %p728 = scmp.le.s32.totalorder 2, %s17
      // Predicated region
      $region53: #{tpu_custom_call.1} parent=5 // pred_check
        %p729 = pneg %p728
      $region54: #{tpu_custom_call.1} parent=5 // pred_check_branch
        %731 = sbr.rel (%p729) target = $region56
      $region55: #{tpu_custom_call.1} parent=5 // pred_region
        %s732 = ssub.s32 %s17, 2
        // Predicated region
        $region57: #{tpu_custom_call.1} parent=55 // pred_check
          %p733 = pneg %p212
        $region58: #{tpu_custom_call.1} parent=55 // pred_check_branch
          %735 = sbr.rel (%p733) target = $region60
        $region59: #{tpu_custom_call.1} parent=55 // pred_region
          %s736 = sand.u32 %s197, 1
          %s737 = scalar_lea.sflag [#allocation5], %s736
          %s738 = sand.u32 %s197, 1
          %s739 = smul.addr %s738, 8
          %s740 = scalar_lea.vmem [#allocation4], %s739
          %741 = dma.done %s737, 128
        $region60: #{tpu_custom_call.1} parent=55 // pred_fallthru
          _
      $region56: #{tpu_custom_call.1} parent=5 // pred_fallthru
        _
    $region6: #{tpu_custom_call.1} parent=1 // loop_footer
      %s21 = sadd.s32 1, %s17
    $region7: #{tpu_custom_call.1} parent=1 // loop_footer_branch
      %16 = sbr.rel target = $region3
    $region8: #{tpu_custom_call.1} parent=1 // loop_exit
      _
    %742 = vsyncpa [#allocation5], 1
    %s743 = scalar_lea.sflag [#allocation5], 1
    %744 = vsyncpa %s743, 1

</llo_original>
